<compile_context>
chip_gen: v7x
topology: tpu7x:2x2x1
jax: 0.10.0
libtpu: 0.0.40
codegen_flags: <defaults>
</compile_context>

<pallas_src>
import functools
import math

import jax
import jax.numpy as jnp
from jax.experimental import pallas as pl
from jax.experimental.pallas import tpu as pltpu

_K = math.sqrt(2.0 / math.pi)          # sqrt(2/pi)
_KA = _K * 0.044715                    # sqrt(2/pi) * 0.044715


def _gelu_kernel(x_ref, o_ref, *, compute_dtype):
    # Math in `compute_dtype` (input dtype for floats, matching torch semantics).
    # Python-float constants are weakly typed so they do not upcast bf16.
    x = x_ref[...].astype(compute_dtype)
    t = x * x
    inner = x * (_K + _KA * t)           # == sqrt(2/pi) * (x + 0.044715 x^3)
    half_x = 0.5 * x
    o_ref[...] = (half_x + half_x * jnp.tanh(inner)).astype(o_ref.dtype)


def _gelu_jnp(x, compute_dtype):
    """Plain-jnp formula for tiny ragged tails (<1024 elements)."""
    xf = x.astype(compute_dtype)
    cdf = 0.5 * (1.0 + jnp.tanh(_K * (xf + 0.044715 * xf ** 3)))
    return (xf * cdf).astype(x.dtype)


def _choose_tile_rows(rows, lanes, itemsize, target_tile_bytes, min_steps=8):
    """Row-tile size: multiple of the dtype's sublane pack, ~target bytes,
    capped so the grid has enough steps to pipeline / feed both v7x TCs."""
    sub = 8 * max(1, 4 // itemsize)      # rows per vreg: 8 f32, 16 bf16, 32 i8/fp8
    if rows < 4 * sub:
        # Tiny array: one full-extent block (full array dims are always legal).
        return rows
    # Bytes-based target, rounded down to the sublane pack.
    tr = max(sub, (target_tile_bytes // (lanes * itemsize)) // sub * sub)
    # Keep >= min_steps grid steps when possible (DMA/compute overlap, dual-TC).
    cap = max(sub, pl.cdiv(rows, min_steps) // sub * sub)
    tr = min(tr, cap)
    # Nudge towards an EVEN step count so v7x's two TensorCores split evenly.
    if pl.cdiv(rows, tr) % 2 == 1:
        for delta in (1, 2, 3, 4):
            cand = tr - delta * sub
            if cand < sub:
                break
            if pl.cdiv(rows, cand) % 2 == 0:
                tr = cand
                break
    return tr


def _gelu_flat(x_flat, compute_dtype, target_tile_bytes, donate):
    """GELU on a flat array whose size is a multiple of 128 (here: of 1024)."""
    n = x_flat.size
    dtype = x_flat.dtype
    itemsize = jnp.dtype(dtype).itemsize

    lanes = 128
    for cand in (8192, 4096, 2048, 1024, 512, 256, 128):
        if n % cand == 0:
            lanes = cand
            break
    rows = n // lanes
    x2d = x_flat.reshape(rows, lanes)

    tr = _choose_tile_rows(rows, lanes, itemsize, target_tile_bytes)
    grid = (pl.cdiv(rows, tr),)

    kernel = functools.partial(_gelu_kernel, compute_dtype=compute_dtype)

    out2d = pl.pallas_call(
        kernel,
        out_shape=jax.ShapeDtypeStruct((rows, lanes), dtype),
        grid_spec=pltpu.PrefetchScalarGridSpec(
            num_scalar_prefetch=0,
            grid=grid,
            in_specs=[pl.BlockSpec((tr, lanes), lambda i: (i, 0))],
            out_specs=pl.BlockSpec((tr, lanes), lambda i: (i, 0)),
        ),
        compiler_params=pltpu.CompilerParams(
            dimension_semantics=("parallel",),
            vmem_limit_bytes=32 * 1024 * 1024,
        ),
        input_output_aliases=({0: 0} if donate else {}),
    )(x2d)
    return out2d.reshape(-1)


def gelu_pallas(x, *, target_tile_bytes=4 * 1024 * 1024, donate=False):
    """Elementwise tanh-approx GELU; any shape/dtype.  `donate=True` lets the
    kernel write in place (analogue of the module's `inplace=True`)."""
    orig_shape = x.shape
    orig_dtype = x.dtype
    n = x.size
    if n == 0:
        return x

    # Torch module computes entirely in x's dtype -> do the same (bf16 math on
    # bf16 inputs keeps v6e/v7x memory-bound; f32 math otherwise).
    if jnp.issubdtype(orig_dtype, jnp.floating):
        compute_dtype = orig_dtype
    else:
        compute_dtype = jnp.float32

    x_flat = jnp.ravel(x)
    rem = n % 1024

    if rem == 0:
        out_flat = _gelu_flat(x_flat, compute_dtype, target_tile_bytes, donate)
    else:
        # Ragged size: kernel on the 1024-aligned prefix, jnp on the tiny tail.
        n_aligned = n - rem
        tail = _gelu_jnp(x_flat[n_aligned:], compute_dtype)
        if n_aligned == 0:
            out_flat = tail
        else:
            head = _gelu_flat(x_flat[:n_aligned], compute_dtype,
                              target_tile_bytes, donate=False)
            out_flat = jnp.concatenate([head, tail])

    return out_flat.reshape(orig_shape)


def gelu_reference(x):
    xf = x.astype(jnp.float32)
    cdf = 0.5 * (1.0 + jnp.tanh(_K * (xf + 0.044715 * xf ** 3)))
    return (xf * cdf).astype(x.dtype)


if __name__ == "__main__":
    key = jax.random.PRNGKey(0)
    k0, k1, k2, k3 = jax.random.split(key, 4)

    # Small NCHW input, consistent with the (elementwise) adapter usage.
    x = jax.random.normal(k0, (2, 4, 16, 16), dtype=jnp.float32)
    out = jax.block_until_ready(gelu_pallas(x))
    ref = gelu_reference(x)
    assert out.shape == x.shape and out.dtype == x.dtype
    assert jnp.allclose(out, ref, atol=1e-5, rtol=1e-5), "mismatch vs reference"

    # Larger aligned input: exercises the multi-step pipelined / dual-TC grid.
    xl = jax.random.normal(k1, (256, 1024), dtype=jnp.float32)
    outl = jax.block_until_ready(gelu_pallas(xl))
    assert jnp.allclose(outl, gelu_reference(xl), atol=1e-5, rtol=1e-5)

    # Ragged size: kernel on the 1024-aligned prefix + jnp tail.
    xr = jax.random.normal(k2, (3, 11, 100), dtype=jnp.float32)
    outr = jax.block_until_ready(gelu_pallas(xr))
    assert jnp.allclose(outr, gelu_reference(xr), atol=1e-5, rtol=1e-5)

    # bf16 path: native-dtype math (same dtype semantics as the torch module).
    xb = jax.random.normal(k3, (4, 8, 128), dtype=jnp.bfloat16)
    outb = jax.block_until_ready(gelu_pallas(xb))
    refb = gelu_reference(xb)
    assert outb.dtype == jnp.bfloat16
    assert jnp.allclose(outb.astype(jnp.float32), refb.astype(jnp.float32),
                        atol=5e-2, rtol=5e-2)

    print("KERNEL_OK")
</pallas_src>

<mosaic_0001>
module attributes {stable_mosaic.version = 11 : i64} {
  func.func @_gelu_kernel(%arg0: i32, %arg1: memref<1x2048xf32, #tpu.memory_space<vmem>>, %arg2: memref<1x2048xf32, #tpu.memory_space<vmem>>) attributes {dimension_semantics = [#tpu.dimension_semantics<parallel>], iteration_bounds = array<i64: 1>, scalar_prefetch = 0 : i64, scratch_operands = 0 : i64, tpu.core_type = #tpu.core_type<tc>, window_params = [{transform_indices = @transform_0, window_bounds = array<i64: 1, 2048>}, {transform_indices = @transform_1, window_bounds = array<i64: 1, 2048>}]} {
    %c0 = arith.constant 0 : index
    %c0_0 = arith.constant 0 : index
    %0 = vector.load %arg1[%c0, %c0_0] : memref<1x2048xf32, #tpu.memory_space<vmem>>, vector<1x2048xf32>
    %1 = arith.mulf %0, %0 : vector<1x2048xf32>
    %cst = arith.constant 0.0356774069 : f32
    %2 = vector.broadcast %cst : f32 to vector<1x2048xf32>
    %3 = arith.mulf %2, %1 : vector<1x2048xf32>
    %cst_1 = arith.constant 0.797884583 : f32
    %4 = vector.broadcast %cst_1 : f32 to vector<1x2048xf32>
    %5 = arith.addf %4, %3 : vector<1x2048xf32>
    %6 = arith.mulf %0, %5 : vector<1x2048xf32>
    %cst_2 = arith.constant 5.000000e-01 : f32
    %7 = vector.broadcast %cst_2 : f32 to vector<1x2048xf32>
    %8 = arith.mulf %7, %0 : vector<1x2048xf32>
    %9 = math.tanh %6 : vector<1x2048xf32>
    %10 = arith.mulf %8, %9 : vector<1x2048xf32>
    %11 = arith.addf %8, %10 : vector<1x2048xf32>
    %c0_3 = arith.constant 0 : index
    %c0_4 = arith.constant 0 : index
    %12 = vector.load %arg2[%c0_3, %c0_4] : memref<1x2048xf32, #tpu.memory_space<vmem>>, vector<1x2048xf32>
    tpu.vector_store %arg2[%c0_3, %c0_4], %11 {strides = array<i32>} : memref<1x2048xf32, #tpu.memory_space<vmem>>, vector<1x2048xf32>,
    return
  }
  func.func @transform_0(%arg0: i32) -> (i32, i32) {
    %c0_i32 = arith.constant 0 : i32
    %c0_i32_0 = arith.constant 0 : i32
    return %arg0, %c0_i32 : i32, i32
  }
  func.func @transform_1(%arg0: i32) -> (i32, i32) {
    %c0_i32 = arith.constant 0 : i32
    %c0_i32_0 = arith.constant 0 : i32
    return %arg0, %c0_i32 : i32, i32
  }
}

</mosaic_0001>

<llo_original>
// kernel: tpu_custom_call.1
$region0: #{tpu_custom_call.1}
  #allocation0 [shape = 'u32[]', space=smem, size = 0x4, offset = 0x4, fixed_abs, tag = 'smem constant byte address 0x4 - core index']
  #allocation1 [shape = 'u32[144,128]{1,0:T(1,128)}', space=vmem, size = 0x12000, scoped, tag = 'internal scratch']
  %s0 = inlined_call_operand.hbm [shape: f32[1,2048], index: 0, kind: input, shape index: {}]
  %s1 = inlined_call_operand.hbm [shape: f32[1,2048], index: 1, kind: output, shape index: {}]
  %s2 = sld [smem:[#allocation0]]
  $region18: #{tpu_custom_call.1} parent=0
    _
  %s4 = ssub.s32 1, %s2
  %s5 = scalar_select 0, %s4, %s2
  $region1: #{tpu_custom_call.1} parent=0
    #allocation2 [shape = 'u8[8192]{0}', space=vmem, size = 0x2000, scoped, tag = 'input window, operand 0, single buffered']
    #allocation3 [shape = 's32[1]{0}', space=sflag, size = 0x4, scoped, tag = 'scoped memory for tpu_custom_call.1']
    #allocation4 [shape = 's32[1]{0}', space=sflag, size = 0x4, scoped, tag = 'scoped memory for tpu_custom_call.1']
    #allocation5 [shape = 'u8[8192]{0}', space=vmem, size = 0x2000, scoped, tag = 'output window, operand 0, single buffered']
    %6 = vsyncpa [#allocation3], 0
    %7 = vsyncpa [#allocation4], 0
    // Predicated region
    $region2: #{tpu_custom_call.1} parent=1 // pred_check
      _
    $region3: #{tpu_custom_call.1} parent=1 // pred_check_branch
      %9 = sbr.rel (0) target = $region5
    $region4: #{tpu_custom_call.1} parent=1 // pred_region
      %s11 = ssub.s32 256, 256
      %12 = vsyncadd [#allocation3], %s11
      %s14 = sshll.u32 [#allocation2], 4
      %s15 = int_to_ptr.vmem [resolvable:$true] %s14
      %17 = dma.hbm_to_vmem [thread:$0]  %s0, 256, %s15, [#allocation3]
    $region5: #{tpu_custom_call.1} parent=1 // pred_fallthru
      _
    // Predicated region
    $region6: #{tpu_custom_call.1} parent=1 // pred_check
      _
    $region7: #{tpu_custom_call.1} parent=1 // pred_check_branch
      %19 = sbr.rel (0) target = $region9
    $region8: #{tpu_custom_call.1} parent=1 // pred_region
      %20 = dma.done [#allocation3], 256
    $region9: #{tpu_custom_call.1} parent=1 // pred_fallthru
      _
    %v21 = vld [vmem:[#allocation2] sm:$0xff]
    %v22 = vld [vmem:[#allocation2 + $0x8] sm:$0xff]
    %v23 = vmul.f32 %v21, %v21
    %v24 = vmul.f32 %v22, %v22
    %v25 = vmul.f32 %v23, 0.035677407
    %v26 = vmul.f32 %v24, 0.035677407
    %v27 = vadd.f32 %v25, 0.7978846
    %v28 = vadd.f32 %v26, 0.7978846
    %v29 = vmul.f32 %v21, %v27
    %v30 = vmul.f32 %v22, %v28
    %v31 = vmul.f32 %v21, 0.5
    %v32 = vmul.f32 %v22, 0.5
    %v33 = vtanh.pop %v29
    %v34 = vtanh.pop %v30
    %v35 = vmul.f32 %v31, %v33
    %v36 = vmul.f32 %v32, %v34
    %v37 = vadd.f32 %v31, %v35
    %v38 = vadd.f32 %v32, %v36
    %39 = vst [vmem:[#allocation5] sm:$0xff] %v37
    %40 = vst [vmem:[#allocation5 + $0x8] sm:$0xff] %v38
    // Predicated region
    $region10: #{tpu_custom_call.1} parent=1 // pred_check
      _
    $region11: #{tpu_custom_call.1} parent=1 // pred_check_branch
      %42 = sbr.rel (0) target = $region13
    $region12: #{tpu_custom_call.1} parent=1 // pred_region
      %s44 = ssub.s32 256, 256
      %45 = vsyncadd [#allocation4], %s44
      %s47 = sshll.u32 [#allocation5], 4
      %s48 = int_to_ptr.vmem [resolvable:$true] %s47
      %50 = dma.vmem_to_hbm [thread:$0]  %s48, 256, %s1, [#allocation4]
    $region13: #{tpu_custom_call.1} parent=1 // pred_fallthru
      _
    // Predicated region
    $region14: #{tpu_custom_call.1} parent=1 // pred_check
      _
    $region15: #{tpu_custom_call.1} parent=1 // pred_check_branch
      %52 = sbr.rel (0) target = $region17
    $region16: #{tpu_custom_call.1} parent=1 // pred_region
      %53 = dma.done [#allocation4], 256
    $region17: #{tpu_custom_call.1} parent=1 // pred_fallthru
      _
    %54 = vsyncpa [#allocation3], 1
    %55 = vsyncpa [#allocation4], 1

</llo_original>
